<compile_context>
chip_gen: v7x
topology: tpu7x:2x2x1
jax: 0.10.0
libtpu: 0.0.40
codegen_flags: <defaults>
</compile_context>

<pallas_src>
import jax
import jax.numpy as jnp
import numpy as np
from jax.experimental import pallas as pl
from jax.experimental.pallas import tpu as pltpu

_LANE = 128
_SUB = 8
_VMEM_BUDGET = 20 * 1024 * 1024  # input double-buffers + scratch, leaves headroom


def _choose_tr(R, tr_target, l_item, t_item):
    """Pick the sublane tile height TR (rows of 128 lanes) per pipeline step."""
    # Per row of 128 lanes: 2 double-buffered input streams + 2 f32 accumulators.
    bytes_per_row = _LANE * (2 * l_item + 2 * t_item + 2 * 4)
    cap = max(_SUB, (_VMEM_BUDGET // bytes_per_row) // _SUB * _SUB)
    cap = min(cap, max(_SUB, (tr_target // _SUB) * _SUB))
    if R <= cap:
        return R          # single tile: block == full row dim (always legal)
    return cap            # multiple of 8


def _make_kernel(TR, T_per, R, mask_needed):
    def kernel(l_ref, t_ref, inter_ref, union_ref, inter_acc, union_acc):
        p = pl.program_id(1)   # split index      (parallel)
        n = pl.program_id(2)   # batch index      (arbitrary / reduced)
        s = pl.program_id(3)   # tile-in-split    (arbitrary / reduced)

        @pl.when((n == 0) & (s == 0))
        def _():
            inter_acc[...] = jnp.zeros_like(inter_acc)
            union_acc[...] = jnp.zeros_like(union_acc)

        l = l_ref[0, 0].astype(jnp.float32)   # (TR, 128)
        t = t_ref[0, 0].astype(jnp.float32)   # (TR, 128)

        if mask_needed:  # static: only emitted when edge/over-provisioned tiles exist
            tile = p * T_per + s
            row = tile * TR + jax.lax.broadcasted_iota(jnp.int32, (TR, 1), 0)
            keep = row < R
            l = jnp.where(keep, l, 0.0)
            t = jnp.where(keep, t, 0.0)

        # VPU-only per-step accumulation; union fused as sum(l + t).
        inter_acc[...] += l * t
        union_acc[...] += l + t

        is_last = (n == pl.num_programs(2) - 1) & (s == pl.num_programs(3) - 1)

        @pl.when(is_last)
        def _():
            inter_ref[...] = jnp.full(inter_ref.shape, jnp.sum(inter_acc[...]),
                                      dtype=inter_ref.dtype)
            union_ref[...] = jnp.full(union_ref.shape, jnp.sum(union_acc[...]),
                                      dtype=union_ref.dtype)

    return kernel


def dice_mean_loss(logits, targets, *, tr_target=4096, num_splits=2):
    """Pallas implementation of DiceMeanLoss.forward for 5-D NCDHW inputs.

    `targets` may be f32/bf16/int8; accumulation is always f32 in-kernel, so
    feeding one-hot targets as bf16 (exact for {0,1}) halves that HBM stream.
    """
    N, C, D, H, W = logits.shape
    S = D * H * W

    l_item = logits.dtype.itemsize
    t_item = targets.dtype.itemsize

    R = -(-S // _LANE)                      # rows of 128 lanes per (n, c) slab

    l = logits.reshape(N, C, S)             # free, contiguous
    t = targets.reshape(N, C, S)
    if R * _LANE != S:
        # TODO(synk): the sub-128 lane remainder still costs one zero-pad copy;
        # avoidable only with lane-blocked (1,1,BS) specs on the flat array.
        pad = ((0, 0), (0, 0), (0, R * _LANE - S))
        l = jnp.pad(l, pad)
        t = jnp.pad(t, pad)
    l = l.reshape(N, C, R, _LANE)
    t = t.reshape(N, C, R, _LANE)

    TR = _choose_tr(R, tr_target, l_item, t_item)
    num_tiles = -(-R // TR)
    P = max(1, min(num_splits, num_tiles))      # splits across TensorCores
    T_per = -(-num_tiles // P)
    mask_needed = (P * T_per * TR) != R         # edge rows / over-provisioned tiles
    clamp_needed = (P * T_per) != num_tiles     # last split has fewer real tiles

    def in_map(c, p, n, s):
        tile = p * T_per + s
        if clamp_needed:
            tile = jnp.minimum(tile, num_tiles - 1)   # duplicates get masked to 0
        return (n, c, tile, 0)

    out_map = lambda c, p, n, s: (c, p, 0, 0)

    kernel = _make_kernel(TR, T_per, R, mask_needed)

    inter_out, union_out = pl.pallas_call(
        kernel,
        out_shape=(
            jax.ShapeDtypeStruct((C, P, _SUB, _LANE), jnp.float32),
            jax.ShapeDtypeStruct((C, P, _SUB, _LANE), jnp.float32),
        ),
        grid_spec=pltpu.PrefetchScalarGridSpec(
            num_scalar_prefetch=0,
            grid=(C, P, N, T_per),
            in_specs=[
                pl.BlockSpec((1, 1, TR, _LANE), in_map),
                pl.BlockSpec((1, 1, TR, _LANE), in_map),
            ],
            out_specs=[
                pl.BlockSpec((1, 1, _SUB, _LANE), out_map),
                pl.BlockSpec((1, 1, _SUB, _LANE), out_map),
            ],
            scratch_shapes=[
                pltpu.VMEM((TR, _LANE), jnp.float32),   # inter partials
                pltpu.VMEM((TR, _LANE), jnp.float32),   # union partials
            ],
        ),
        compiler_params=pltpu.CompilerParams(
            dimension_semantics=("parallel", "parallel", "arbitrary", "arbitrary"),
            vmem_limit_bytes=32 * 1024 * 1024,
        ),
        cost_estimate=pl.CostEstimate(
            flops=3 * N * C * S,
            transcendentals=0,
            bytes_accessed=N * C * S * (l_item + t_item)
            + 2 * C * P * _SUB * _LANE * 4,
        ),
    )(l, t)

    inter = jnp.sum(inter_out[:, :, 0, 0], axis=1)   # (C,) — combine splits
    union = jnp.sum(union_out[:, :, 0, 0], axis=1)   # (C,)
    dice = (2.0 * inter + 1.0) / (union + 1.0)
    return 1.0 - jnp.mean(dice)


def _reference(logits, targets):
    C = logits.shape[1]
    dice_sum = 0.0
    for i in range(C):
        li = logits[:, i].astype(jnp.float32)
        ti = targets[:, i].astype(jnp.float32)
        inter = jnp.sum(li * ti)
        union = jnp.sum(li) + jnp.sum(ti)
        dice_sum += (2.0 * inter + 1.0) / (union + 1.0)
    return 1.0 - dice_sum / C


if __name__ == "__main__":
    key = jax.random.PRNGKey(0)
    k1, k2, k3, k4 = jax.random.split(key, 4)

    # Case 1: small NCDHW, S % 128 == 0 (no pad, single tile per slab).
    N, C, D, H, W = 2, 4, 4, 8, 8
    logits = jax.nn.sigmoid(jax.random.normal(k1, (N, C, D, H, W), jnp.float32))
    # One-hot / binary masks: bf16 is exact for {0,1} and halves the target stream.
    targets = (jax.random.uniform(k2, (N, C, D, H, W)) > 0.5).astype(jnp.bfloat16)

    loss = dice_mean_loss(logits, targets)
    jax.block_until_ready(loss)
    ref = _reference(logits, targets)
    assert np.allclose(np.asarray(loss), np.asarray(ref), rtol=1e-5, atol=1e-5), (loss, ref)

    # Case 2: odd class count, S % 128 != 0, tiny tr_target to force multi-tile,
    # 2-way split, edge-row masking and clamped over-provisioned tiles.
    N2, C2, D2, H2, W2 = 2, 3, 6, 20, 21
    logits2 = jax.nn.sigmoid(jax.random.normal(k3, (N2, C2, D2, H2, W2), jnp.float32))
    targets2 = (jax.random.uniform(k4, (N2, C2, D2, H2, W2)) > 0.5).astype(jnp.bfloat16)
    loss2 = dice_mean_loss(logits2, targets2, tr_target=8, num_splits=2)
    jax.block_until_ready(loss2)
    ref2 = _reference(logits2, targets2)
    assert np.allclose(np.asarray(loss2), np.asarray(ref2), rtol=1e-5, atol=1e-5), (loss2, ref2)

    print("KERNEL_OK")
</pallas_src>

<mosaic_0001>
module attributes {stable_mosaic.version = 11 : i64} {
  func.func @kernel(%arg0: i32, %arg1: i32, %arg2: i32, %arg3: i32, %arg4: memref<1x1x2x128xf32, #tpu.memory_space<vmem>>, %arg5: memref<1x1x2x128xbf16, #tpu.memory_space<vmem>>, %arg6: memref<1x1x8x128xf32, #tpu.memory_space<vmem>>, %arg7: memref<1x1x8x128xf32, #tpu.memory_space<vmem>>, %arg8: memref<2x128xf32, #tpu.memory_space<vmem>>, %arg9: memref<2x128xf32, #tpu.memory_space<vmem>>) attributes {dimension_semantics = [#tpu.dimension_semantics<parallel>, #tpu.dimension_semantics<parallel>, #tpu.dimension_semantics<arbitrary>, #tpu.dimension_semantics<arbitrary>], iteration_bounds = array<i64: 4, 1, 2, 1>, scalar_prefetch = 0 : i64, scratch_operands = 2 : i64, tpu.core_type = #tpu.core_type<tc>, window_params = [{transform_indices = @transform_0, window_bounds = array<i64: 1, 1, 2, 128>}, {transform_indices = @transform_1, window_bounds = array<i64: 1, 1, 2, 128>}, {transform_indices = @transform_2, window_bounds = array<i64: 1, 1, 8, 128>}, {transform_indices = @transform_3, window_bounds = array<i64: 1, 1, 8, 128>}]} {
    %c0_i32 = arith.constant 0 : i32
    %0 = arith.cmpi eq, %arg2, %c0_i32 : i32
    %c0_i32_0 = arith.constant 0 : i32
    %1 = arith.cmpi eq, %arg3, %c0_i32_0 : i32
    %2 = arith.andi %0, %1 : i1
    %3 = arith.extui %2 : i1 to i32
    %c0_i32_1 = arith.constant 0 : i32
    %4 = arith.cmpi ne, %3, %c0_i32_1 : i32
    scf.if %4 {
      %cst = arith.constant 0.000000e+00 : f32
      %23 = vector.broadcast %cst : f32 to vector<2x128xf32>
      %c0_19 = arith.constant 0 : index
      %c0_20 = arith.constant 0 : index
      %24 = vector.load %arg8[%c0_19, %c0_20] : memref<2x128xf32, #tpu.memory_space<vmem>>, vector<2x128xf32>
      tpu.vector_store %arg8[%c0_19, %c0_20], %23 {strides = array<i32>} : memref<2x128xf32, #tpu.memory_space<vmem>>, vector<2x128xf32>,
      %cst_21 = arith.constant 0.000000e+00 : f32
      %25 = vector.broadcast %cst_21 : f32 to vector<2x128xf32>
      %c0_22 = arith.constant 0 : index
      %c0_23 = arith.constant 0 : index
      %26 = vector.load %arg9[%c0_22, %c0_23] : memref<2x128xf32, #tpu.memory_space<vmem>>, vector<2x128xf32>
      tpu.vector_store %arg9[%c0_22, %c0_23], %25 {strides = array<i32>} : memref<2x128xf32, #tpu.memory_space<vmem>>, vector<2x128xf32>,
    } else {
    }
    %c0 = arith.constant 0 : index
    %c0_2 = arith.constant 0 : index
    %c0_3 = arith.constant 0 : index
    %c0_4 = arith.constant 0 : index
    %5 = vector.load %arg4[%c0, %c0_2, %c0_3, %c0_4] : memref<1x1x2x128xf32, #tpu.memory_space<vmem>>, vector<1x1x2x128xf32>
    %6 = vector.shape_cast %5 : vector<1x1x2x128xf32> to vector<2x128xf32>
    %c0_5 = arith.constant 0 : index
    %c0_6 = arith.constant 0 : index
    %c0_7 = arith.constant 0 : index
    %c0_8 = arith.constant 0 : index
    %7 = vector.load %arg5[%c0_5, %c0_6, %c0_7, %c0_8] : memref<1x1x2x128xbf16, #tpu.memory_space<vmem>>, vector<1x1x2x128xbf16>
    %8 = vector.shape_cast %7 : vector<1x1x2x128xbf16> to vector<2x128xbf16>
    %9 = arith.extf %8 : vector<2x128xbf16> to vector<2x128xf32>
    %c0_9 = arith.constant 0 : index
    %c0_10 = arith.constant 0 : index
    %10 = vector.load %arg8[%c0_9, %c0_10] : memref<2x128xf32, #tpu.memory_space<vmem>>, vector<2x128xf32>
    %11 = arith.mulf %6, %9 : vector<2x128xf32>
    %12 = arith.addf %10, %11 : vector<2x128xf32>
    %c0_11 = arith.constant 0 : index
    %c0_12 = arith.constant 0 : index
    %13 = vector.load %arg8[%c0_11, %c0_12] : memref<2x128xf32, #tpu.memory_space<vmem>>, vector<2x128xf32>
    tpu.vector_store %arg8[%c0_11, %c0_12], %12 {strides = array<i32>} : memref<2x128xf32, #tpu.memory_space<vmem>>, vector<2x128xf32>,
    %c0_13 = arith.constant 0 : index
    %c0_14 = arith.constant 0 : index
    %14 = vector.load %arg9[%c0_13, %c0_14] : memref<2x128xf32, #tpu.memory_space<vmem>>, vector<2x128xf32>
    %15 = arith.addf %6, %9 : vector<2x128xf32>
    %16 = arith.addf %14, %15 : vector<2x128xf32>
    %c0_15 = arith.constant 0 : index
    %c0_16 = arith.constant 0 : index
    %17 = vector.load %arg9[%c0_15, %c0_16] : memref<2x128xf32, #tpu.memory_space<vmem>>, vector<2x128xf32>
    tpu.vector_store %arg9[%c0_15, %c0_16], %16 {strides = array<i32>} : memref<2x128xf32, #tpu.memory_space<vmem>>, vector<2x128xf32>,
    %c1_i32 = arith.constant 1 : i32
    %18 = arith.cmpi eq, %arg2, %c1_i32 : i32
    %c0_i32_17 = arith.constant 0 : i32
    %19 = arith.cmpi eq, %arg3, %c0_i32_17 : i32
    %20 = arith.andi %18, %19 : i1
    %21 = arith.extui %20 : i1 to i32
    %c0_i32_18 = arith.constant 0 : i32
    %22 = arith.cmpi ne, %21, %c0_i32_18 : i32
    scf.if %22 {
      %c0_19 = arith.constant 0 : index
      %c0_20 = arith.constant 0 : index
      %23 = vector.load %arg8[%c0_19, %c0_20] : memref<2x128xf32, #tpu.memory_space<vmem>>, vector<2x128xf32>
      %24 = vector.shape_cast %23 : vector<2x128xf32> to vector<1x2x128xf32>
      %cst = arith.constant dense<0.000000e+00> : vector<1xf32>
      %25 = vector.multi_reduction <add>, %24, %cst [1, 2] : vector<1x2x128xf32> to vector<1xf32>
      %26 = vector.shape_cast %25 : vector<1xf32> to vector<1x1x1xf32>
      %27 = vector.extract %26[0, 0, 0] : f32 from vector<1x1x1xf32>
      %28 = vector.broadcast %27 : f32 to vector<1x1x8x128xf32>
      %c0_21 = arith.constant 0 : index
      %c0_22 = arith.constant 0 : index
      %c0_23 = arith.constant 0 : index
      %c0_24 = arith.constant 0 : index
      %29 = vector.load %arg6[%c0_21, %c0_22, %c0_23, %c0_24] : memref<1x1x8x128xf32, #tpu.memory_space<vmem>>, vector<1x1x8x128xf32>
      tpu.vector_store %arg6[%c0_21, %c0_22, %c0_23, %c0_24], %28 {strides = array<i32>} : memref<1x1x8x128xf32, #tpu.memory_space<vmem>>, vector<1x1x8x128xf32>,
      %c0_25 = arith.constant 0 : index
      %c0_26 = arith.constant 0 : index
      %30 = vector.load %arg9[%c0_25, %c0_26] : memref<2x128xf32, #tpu.memory_space<vmem>>, vector<2x128xf32>
      %31 = vector.shape_cast %30 : vector<2x128xf32> to vector<1x2x128xf32>
      %cst_27 = arith.constant dense<0.000000e+00> : vector<1xf32>
      %32 = vector.multi_reduction <add>, %31, %cst_27 [1, 2] : vector<1x2x128xf32> to vector<1xf32>
      %33 = vector.shape_cast %32 : vector<1xf32> to vector<1x1x1xf32>
      %34 = vector.extract %33[0, 0, 0] : f32 from vector<1x1x1xf32>
      %35 = vector.broadcast %34 : f32 to vector<1x1x8x128xf32>
      %c0_28 = arith.constant 0 : index
      %c0_29 = arith.constant 0 : index
      %c0_30 = arith.constant 0 : index
      %c0_31 = arith.constant 0 : index
      %36 = vector.load %arg7[%c0_28, %c0_29, %c0_30, %c0_31] : memref<1x1x8x128xf32, #tpu.memory_space<vmem>>, vector<1x1x8x128xf32>
      tpu.vector_store %arg7[%c0_28, %c0_29, %c0_30, %c0_31], %35 {strides = array<i32>} : memref<1x1x8x128xf32, #tpu.memory_space<vmem>>, vector<1x1x8x128xf32>,
    } else {
    }
    return
  }
  func.func @transform_0(%arg0: i32, %arg1: i32, %arg2: i32, %arg3: i32) -> (i32, i32, i32, i32) {
    %c1_i32 = arith.constant 1 : i32
    %0 = arith.muli %arg1, %c1_i32 : i32
    %1 = arith.addi %0, %arg3 : i32
    %c0_i32 = arith.constant 0 : i32
    %c0_i32_0 = arith.constant 0 : i32
    return %arg2, %arg0, %1, %c0_i32 : i32, i32, i32, i32
  }
  func.func @transform_1(%arg0: i32, %arg1: i32, %arg2: i32, %arg3: i32) -> (i32, i32, i32, i32) {
    %c1_i32 = arith.constant 1 : i32
    %0 = arith.muli %arg1, %c1_i32 : i32
    %1 = arith.addi %0, %arg3 : i32
    %c0_i32 = arith.constant 0 : i32
    %c0_i32_0 = arith.constant 0 : i32
    return %arg2, %arg0, %1, %c0_i32 : i32, i32, i32, i32
  }
  func.func @transform_2(%arg0: i32, %arg1: i32, %arg2: i32, %arg3: i32) -> (i32, i32, i32, i32) {
    %c0_i32 = arith.constant 0 : i32
    %c0_i32_0 = arith.constant 0 : i32
    %c0_i32_1 = arith.constant 0 : i32
    return %arg0, %arg1, %c0_i32, %c0_i32_0 : i32, i32, i32, i32
  }
  func.func @transform_3(%arg0: i32, %arg1: i32, %arg2: i32, %arg3: i32) -> (i32, i32, i32, i32) {
    %c0_i32 = arith.constant 0 : i32
    %c0_i32_0 = arith.constant 0 : i32
    %c0_i32_1 = arith.constant 0 : i32
    return %arg0, %arg1, %c0_i32, %c0_i32_0 : i32, i32, i32, i32
  }
}

</mosaic_0001>

<llo_original>
// kernel: tpu_custom_call.1
$region0: #{tpu_custom_call.1}
  #allocation0 [shape = 'u32[]', space=smem, size = 0x4, offset = 0x4, fixed_abs, tag = 'smem constant byte address 0x4 - core index']
  #allocation1 [shape = 'u32[144,128]{1,0:T(1,128)}', space=vmem, size = 0x12000, scoped, tag = 'internal scratch']
  #allocation2 [shape = 'f32[2,128]{1,0:T(2,128)}', space=vmem, size = 0x400, scoped, tag = 'scratch operand']
  #allocation3 [shape = 'f32[2,128]{1,0:T(2,128)}', space=vmem, size = 0x400, scoped, tag = 'scratch operand']
  %s0 = inlined_call_operand.hbm [shape: f32[2,4,2,128], index: 0, kind: input, shape index: {}]
  %s1 = inlined_call_operand.hbm [shape: bf16[2,4,2,128], index: 1, kind: input, shape index: {}]
  %s2 = inlined_call_operand.hbm [shape: f32[4,1,8,128], index: 2, kind: output, shape index: {0}]
  %s3 = inlined_call_operand.hbm [shape: f32[4,1,8,128], index: 3, kind: output, shape index: {1}]
  %4 = xla_tuple %s2, %s3
  %s5 = sld [smem:[#allocation0]]
  $region65: #{tpu_custom_call.1} parent=0
    _
  %s7 = ssub.s32 1, %s5
  %s8 = scalar_select 0, %s7, %s5
  $region1: #{tpu_custom_call.1} parent=0
    #allocation4 [shape = 'u8[2048]{0}', space=vmem, size = 0x800, scoped, tag = 'input window, operand 0']
    #allocation5 [shape = 's32[2]{0}', space=sflag, size = 0x8, scoped, tag = 'scoped memory for tpu_custom_call.1']
    #allocation6 [shape = 's32[2]{0}', space=sflag, size = 0x8, scoped, tag = 'scoped memory for tpu_custom_call.1']
    #allocation7 [shape = 'u8[1024]{0}', space=vmem, size = 0x400, scoped, tag = 'input window, operand 1']
    #allocation8 [shape = 's32[2]{0}', space=sflag, size = 0x8, scoped, tag = 'scoped memory for tpu_custom_call.1']
    #allocation9 [shape = 'u8[8192]{0}', space=vmem, size = 0x2000, scoped, tag = 'output window, operand 0']
    #allocation10 [shape = 'u8[8192]{0}', space=vmem, size = 0x2000, scoped, tag = 'output window, operand 1']
    #allocation11 [shape = 's32[2]{0}', space=sflag, size = 0x8, scoped, tag = 'scoped memory for tpu_custom_call.1']
    %9 = vsyncpa [#allocation5], 0
    %s10 = scalar_lea.sflag [#allocation5], 1
    %11 = vsyncpa %s10, 0
    %12 = vsyncpa [#allocation8], 0
    %s13 = scalar_lea.sflag [#allocation8], 1
    %14 = vsyncpa %s13, 0
    %15 = vsyncpa [#allocation6], 0
    %s16 = scalar_lea.sflag [#allocation6], 1
    %17 = vsyncpa %s16, 0
    %18 = vsyncpa [#allocation11], 0
    %s19 = scalar_lea.sflag [#allocation11], 1
    %20 = vsyncpa %s19, 0
    loop: start=0, step=1, limit=10
    $region2: #{tpu_custom_call.1} parent=1 // loop_pre_header
      _
    $region3: #{tpu_custom_call.1} parent=1 // loop_header
      %s22 = sphi 0, %s26
      %p23 = scmp.ge.s32.totalorder %s22, 10
      %s29 = sphi 0, %s55
      %s30 = sphi 0, %s51
      %s31 = sphi 0, %s47
      %s32 = sphi 0, %s43
      %s33 = sphi 0, %s29
      %s34 = sphi 0, %s30
      %s35 = sphi 0, %s31
      %s36 = sphi 0, %s32
      %s37 = sphi 0, %s33
      %s38 = sphi 0, %s34
      %s39 = sphi 0, %s35
      %s40 = sphi 0, %s36
      %s64 = sphi 0, %s66
      %s67 = sphi 0, %s64
      %s68 = sphi 0, %s67
      %s84 = sphi 0, %s68
      %s96 = sphi 0, %s98
      %s99 = sphi 0, %s96
      %s100 = sphi 0, %s99
      %s116 = sphi 0, %s100
      %s124 = sphi 0, %s126
      %s127 = sphi 0, %s124
      %s128 = sphi 0, %s127
      %s144 = sphi 0, %s128
      %s152 = sphi 0, %s154
      %s155 = sphi 0, %s152
      %s156 = sphi 0, %s155
      %s172 = sphi 0, %s156
    $region4: #{tpu_custom_call.1} parent=1 // loop_header_branch
      %25 = sbr.rel (%p23) target = $region8
    $region5: #{tpu_custom_call.1} parent=1 // loop_body
      %s27 = ssub.s32 %s22, 1
      %s28 = ssub.s32 %s22, 2
      %s41 = sadd.s32 1, %s32
      %p42 = scmp.ge.s32.totalorder %s41, 1
      %s43 = scalar_select %p42, 0, %s41
      %s44 = sadd.s32 1, %s31
      %s45 = scalar_select %p42, %s44, %s31
      %p46 = scmp.ge.s32.totalorder %s45, 2
      %s47 = scalar_select %p46, 0, %s45
      %s48 = sadd.s32 1, %s30
      %s49 = scalar_select %p46, %s48, %s30
      %p50 = scmp.ge.s32.totalorder %s49, 1
      %s51 = scalar_select %p50, 0, %s49
      %s52 = sadd.s32 1, %s29
      %s53 = scalar_select %p50, %s52, %s29
      %p54 = scmp.ge.s32.totalorder %s53, 4
      %s55 = scalar_select %p54, 0, %s53
      %s56 = sadd.s32 %s30, %s32
      %s57 = sadd.s32 %s51, %s43
      %s58 = ssub.s32 %s31, %s47
      %s59 = ssub.s32 %s29, %s55
      %s60 = sor.u32 %s58, %s59
      %s61 = ssub.s32 %s56, %s57
      %s62 = sor.u32 %s60, %s61
      %p63 = scmp.eq.s32.totalorder %s62, 0
      %s65 = sadd.s32 %s64, 1
      %s66 = scalar_select %p63, %s64, %s65
      %p69 = pneg %p63
      %p70 = scmp.eq.s32.totalorder %s22, 7
      %p71 = por %p69, %p70
      %p72 = scmp.ne.s32.totalorder %s64, %s67
      %p73 = scmp.eq.s32.totalorder %s22, 0
      %p74 = por %p72, %p73
      %p75 = scmp.ne.s32.totalorder %s64, %s67
      %p76 = scmp.eq.s32.totalorder %s27, 7
      %p77 = por %p75, %p76
      %p78 = scmp.ne.s32.totalorder %s67, %s68
      %p79 = scmp.eq.s32.totalorder %s27, 0
      %p80 = por %p78, %p79
      %p81 = scmp.ne.s32.totalorder %s67, %s68
      %p82 = scmp.eq.s32.totalorder %s28, 7
      %p83 = por %p81, %p82
      %p85 = scmp.ne.s32.totalorder %s68, %s84
      %p86 = scmp.eq.s32.totalorder %s28, 0
      %p87 = por %p85, %p86
      %s88 = sadd.s32 %s30, %s32
      %s89 = sadd.s32 %s51, %s43
      %s90 = ssub.s32 %s31, %s47
      %s91 = ssub.s32 %s29, %s55
      %s92 = sor.u32 %s90, %s91
      %s93 = ssub.s32 %s88, %s89
      %s94 = sor.u32 %s92, %s93
      %p95 = scmp.eq.s32.totalorder %s94, 0
      %s97 = sadd.s32 %s96, 1
      %s98 = scalar_select %p95, %s96, %s97
      %p101 = pneg %p95
      %p102 = scmp.eq.s32.totalorder %s22, 7
      %p103 = por %p101, %p102
      %p104 = scmp.ne.s32.totalorder %s96, %s99
      %p105 = scmp.eq.s32.totalorder %s22, 0
      %p106 = por %p104, %p105
      %p107 = scmp.ne.s32.totalorder %s96, %s99
      %p108 = scmp.eq.s32.totalorder %s27, 7
      %p109 = por %p107, %p108
      %p110 = scmp.ne.s32.totalorder %s99, %s100
      %p111 = scmp.eq.s32.totalorder %s27, 0
      %p112 = por %p110, %p111
      %p113 = scmp.ne.s32.totalorder %s99, %s100
      %p114 = scmp.eq.s32.totalorder %s28, 7
      %p115 = por %p113, %p114
      %p117 = scmp.ne.s32.totalorder %s100, %s116
      %p118 = scmp.eq.s32.totalorder %s28, 0
      %p119 = por %p117, %p118
      %s120 = ssub.s32 %s29, %s55
      %s121 = ssub.s32 %s30, %s51
      %s122 = sor.u32 %s120, %s121
      %p123 = scmp.eq.s32.totalorder %s122, 0
      %s125 = sadd.s32 %s124, 1
      %s126 = scalar_select %p123, %s124, %s125
      %p129 = pneg %p123
      %p130 = scmp.eq.s32.totalorder %s22, 7
      %p131 = por %p129, %p130
      %p132 = scmp.ne.s32.totalorder %s124, %s127
      %p133 = scmp.eq.s32.totalorder %s22, 0
      %p134 = por %p132, %p133
      %p135 = scmp.ne.s32.totalorder %s124, %s127
      %p136 = scmp.eq.s32.totalorder %s27, 7
      %p137 = por %p135, %p136
      %p138 = scmp.ne.s32.totalorder %s127, %s128
      %p139 = scmp.eq.s32.totalorder %s27, 0
      %p140 = por %p138, %p139
      %p141 = scmp.ne.s32.totalorder %s127, %s128
      %p142 = scmp.eq.s32.totalorder %s28, 7
      %p143 = por %p141, %p142
      %p145 = scmp.ne.s32.totalorder %s128, %s144
      %p146 = scmp.eq.s32.totalorder %s28, 0
      %p147 = por %p145, %p146
      %s148 = ssub.s32 %s29, %s55
      %s149 = ssub.s32 %s30, %s51
      %s150 = sor.u32 %s148, %s149
      %p151 = scmp.eq.s32.totalorder %s150, 0
      %s153 = sadd.s32 %s152, 1
      %s154 = scalar_select %p151, %s152, %s153
      %p157 = pneg %p151
      %p158 = scmp.eq.s32.totalorder %s22, 7
      %p159 = por %p157, %p158
      %p160 = scmp.ne.s32.totalorder %s152, %s155
      %p161 = scmp.eq.s32.totalorder %s22, 0
      %p162 = por %p160, %p161
      %p163 = scmp.ne.s32.totalorder %s152, %s155
      %p164 = scmp.eq.s32.totalorder %s27, 7
      %p165 = por %p163, %p164
      %p166 = scmp.ne.s32.totalorder %s155, %s156
      %p167 = scmp.eq.s32.totalorder %s27, 0
      %p168 = por %p166, %p167
      %p169 = scmp.ne.s32.totalorder %s155, %s156
      %p170 = scmp.eq.s32.totalorder %s28, 7
      %p171 = por %p169, %p170
      %p173 = scmp.ne.s32.totalorder %s156, %s172
      %p174 = scmp.eq.s32.totalorder %s28, 0
      %p175 = por %p173, %p174
      %p176 = scmp.le.s32.totalorder 1, %s22
      %p177 = scmp.lt.s32.totalorder %s22, 9
      %p178 = pnand %p176, %p177
      %p179 = pneg %p178
      // Predicated region
      $region9: #{tpu_custom_call.1} parent=5 // pred_check
        _
      $region10: #{tpu_custom_call.1} parent=5 // pred_check_branch
        %181 = sbr.rel (%p178) target = $region12
      $region11: #{tpu_custom_call.1} parent=5 // pred_region
        %s182 = ssub.s32 %s22, 1
      $region12: #{tpu_custom_call.1} parent=5 // pred_fallthru
        _
      %p183 = scmp.lt.s32.totalorder %s22, 8
      // Predicated region
      $region13: #{tpu_custom_call.1} parent=5 // pred_check
        %p184 = pneg %p183
      $region14: #{tpu_custom_call.1} parent=5 // pred_check_branch
        %186 = sbr.rel (%p184) target = $region16
      $region15: #{tpu_custom_call.1} parent=5 // pred_region
        // Predicated region
        $region17: #{tpu_custom_call.1} parent=15 // pred_check
          %p187 = pneg %p74
        $region18: #{tpu_custom_call.1} parent=15 // pred_check_branch
          %189 = sbr.rel (%p187) target = $region20
        $region19: #{tpu_custom_call.1} parent=15 // pred_region
          %s190 = sand.u32 %s64, 1
          %s191 = scalar_lea.sflag [#allocation5], %s190
          %s192 = sand.u32 %s64, 1
          %s193 = smul.addr %s192, 2
          %s194 = scalar_lea.vmem [#allocation4], %s193
          %s195 = sadd.s32 %s30, %s32
          %s197 = ssub.s32 32, 32
          %198 = vsyncadd %s191, %s197
          %s199 = sadd.s32 %s195, %s29
          %s200 = smul.addr %s31, 4
          %s201 = sadd.s32 %s199, %s200
          %s202 = smul.addr %s201, 32
          %s203 = scalar_lea.hbm %s0, %s202
          %s205 = sshll.u32 %s194, 4
          %s206 = int_to_ptr.vmem [resolvable:$true] %s205
          %208 = dma.hbm_to_vmem [thread:$0]  %s203, 32, %s206, %s191
        $region20: #{tpu_custom_call.1} parent=15 // pred_fallthru
          _
        // Predicated region
        $region21: #{tpu_custom_call.1} parent=15 // pred_check
          %p209 = pneg %p106
        $region22: #{tpu_custom_call.1} parent=15 // pred_check_branch
          %211 = sbr.rel (%p209) target = $region24
        $region23: #{tpu_custom_call.1} parent=15 // pred_region
          %s212 = sand.u32 %s96, 1
          %s213 = scalar_lea.sflag [#allocation8], %s212
          %s214 = sand.u32 %s96, 1
          %s215 = scalar_lea.vmem [#allocation7], %s214
          %s216 = sadd.s32 %s30, %s32
          %s218 = ssub.s32 16, 16
          %219 = vsyncadd %s213, %s218
          %s220 = sadd.s32 %s216, %s29
          %s221 = smul.addr %s31, 4
          %s222 = sadd.s32 %s220, %s221
          %s223 = smul.addr %s222, 16
          %s224 = scalar_lea.hbm %s1, %s223
          %s226 = sshll.u32 %s215, 4
          %s227 = int_to_ptr.vmem [resolvable:$true] %s226
          %229 = dma.hbm_to_vmem [thread:$0]  %s224, 16, %s227, %s213
        $region24: #{tpu_custom_call.1} parent=15 // pred_fallthru
          _
      $region16: #{tpu_custom_call.1} parent=5 // pred_fallthru
        _
      %p230 = scmp.le.s32.totalorder 1, %s22
      %p231 = scmp.lt.s32.totalorder %s22, 9
      %p232 = pnand %p230, %p231
      %p233 = pneg %p232
      // Predicated region
      $region25: #{tpu_custom_call.1} parent=5 // pred_check
        _
      $region26: #{tpu_custom_call.1} parent=5 // pred_check_branch
        %235 = sbr.rel (%p232) target = $region28
      $region27: #{tpu_custom_call.1} parent=5 // pred_region
        %s236 = ssub.s32 %s22, 1
        %s237 = sand.u32 %s67, 1
        %s238 = scalar_lea.sflag [#allocation5], %s237
        %s239 = sand.u32 %s67, 1
        %s240 = smul.addr %s239, 2
        %s241 = scalar_lea.vmem [#allocation4], %s240
        // Predicated region
        $region29: #{tpu_custom_call.1} parent=27 // pred_check
          %p242 = pneg %p80
        $region30: #{tpu_custom_call.1} parent=27 // pred_check_branch
          %244 = sbr.rel (%p242) target = $region32
        $region31: #{tpu_custom_call.1} parent=27 // pred_region
          %245 = dma.done %s238, 32
        $region32: #{tpu_custom_call.1} parent=27 // pred_fallthru
          _
        %s246 = sand.u32 %s99, 1
        %s247 = scalar_lea.sflag [#allocation8], %s246
        %s248 = sand.u32 %s99, 1
        %s249 = scalar_lea.vmem [#allocation7], %s248
        // Predicated region
        $region33: #{tpu_custom_call.1} parent=27 // pred_check
          %p250 = pneg %p112
        $region34: #{tpu_custom_call.1} parent=27 // pred_check_branch
          %252 = sbr.rel (%p250) target = $region36
        $region35: #{tpu_custom_call.1} parent=27 // pred_region
          %253 = dma.done %s247, 16
        $region36: #{tpu_custom_call.1} parent=27 // pred_fallthru
          _
        %s254 = sand.u32 %s67, 1
        %s255 = scalar_lea.sflag [#allocation5], %s254
        %s256 = sand.u32 %s67, 1
        %s257 = smul.addr %s256, 2
        %s258 = scalar_lea.vmem [#allocation4], %s257
        %p259 = pneg %p80
        %p260 = pneg %p77
        %s261 = sand.u32 %s99, 1
        %s262 = scalar_lea.sflag [#allocation8], %s261
        %s263 = sand.u32 %s99, 1
        %s264 = scalar_lea.vmem [#allocation7], %s263
        %p265 = pneg %p112
        %p266 = pneg %p109
        %p267 = pneg %p140
        %p268 = pneg %p137
        %s269 = sand.u32 %s127, 1
        %s270 = scalar_lea.sflag [#allocation6], %s269
        %s271 = sand.u32 %s127, 1
        %s272 = smul.addr %s271, 8
        %s273 = scalar_lea.vmem [#allocation9], %s272
        %p274 = pneg %p168
        %p275 = pneg %p165
        %s276 = sand.u32 %s155, 1
        %s277 = scalar_lea.sflag [#allocation11], %s276
        %s278 = sand.u32 %s155, 1
        %s279 = smul.addr %s278, 8
        %s280 = scalar_lea.vmem [#allocation10], %s279
        %s281 = sadd.s32 %s34, %s36
        %s282 = sadd.s32 %s34, %s36
        %p283 = scmp.eq.s32.totalorder %s35, 0
        %p284 = scmp.eq.s32.totalorder %s36, 0
        %p285 = pnand %p283, %p284
        %p286 = pneg %p285
        // Predicated region
        $region37: #{tpu_custom_call.1} parent=27 // pred_check
          _
        $region38: #{tpu_custom_call.1} parent=27 // pred_check_branch
          %288 = sbr.rel (%p285) target = $region40
        $region39: #{tpu_custom_call.1} parent=27 // pred_region
          %289 = vst [vmem:[#allocation2] sm:$0x3] 0.0
          %290 = vst [vmem:[#allocation3] sm:$0x3] 0.0
        $region40: #{tpu_custom_call.1} parent=27 // pred_fallthru
          _
        %v291 = vld [vmem:[%s241] sm:$0x3]
        %v292 = vld [vmem:[%s249] sm:$0x1]
        %v293 = vunpack.c.l.bf16 %v292
        %v294 = vld [vmem:[#allocation2] sm:$0x3]
        %v295 = vmul.f32 %v291, %v293
        %v296 = vadd.f32 %v294, %v295
        %297 = vst [vmem:[#allocation2] sm:$0x3] %v296
        %v298 = vld [vmem:[#allocation3] sm:$0x3]
        %v299 = vadd.f32 %v291, %v293
        %v300 = vadd.f32 %v298, %v299
        %301 = vst [vmem:[#allocation3] sm:$0x3] %v300
        %p302 = scmp.eq.s32.totalorder %s35, 1
        %p303 = pnand %p302, %p284
        %p304 = pneg %p303
        // Predicated region
        $region41: #{tpu_custom_call.1} parent=27 // pred_check
          _
        $region42: #{tpu_custom_call.1} parent=27 // pred_check_branch
          %306 = sbr.rel (%p303) target = $region44
        $region43: #{tpu_custom_call.1} parent=27 // pred_region
          %v307 = vld [vmem:[#allocation2] sm:$0x3]
          %vm308 = vcmask 1041408
          %v309 = vsel %vm308, %v307, 0.0
          %310 = vadd.xlane.f32.xlu0 %v309
          %v311 = vpop.xlane.xlu0 %310
          %v312 = vrot.slane %v311, 4
          %v313 = vadd.f32 %v311, %v312
          %v314 = vrot.slane %v313, 2
          %v315 = vadd.f32 %v313, %v314
          %v316 = vrot.slane %v315, 1
          %v317 = vadd.f32 %v315, %v316
          %s318 = vtos %v317
          %v319 = vstv %s318
          %320 = vst [vmem:[%s273] sm:$0xff] %v319
          %v321 = vld [vmem:[#allocation3] sm:$0x3]
          %v322 = vsel %vm308, %v321, 0.0
          %323 = vadd.xlane.f32.xlu0 %v322
          %v324 = vpop.xlane.xlu0 %323
          %v325 = vrot.slane %v324, 4
          %v326 = vadd.f32 %v324, %v325
          %v327 = vrot.slane %v326, 2
          %v328 = vadd.f32 %v326, %v327
          %v329 = vrot.slane %v328, 1
          %v330 = vadd.f32 %v328, %v329
          %s331 = vtos %v330
          %v332 = vstv %s331
          %333 = vst [vmem:[%s280] sm:$0xff] %v332
        $region44: #{tpu_custom_call.1} parent=27 // pred_fallthru
          _
        %s334 = sand.u32 %s127, 1
        %s335 = scalar_lea.sflag [#allocation6], %s334
        %s336 = sand.u32 %s127, 1
        %s337 = smul.addr %s336, 8
        %s338 = scalar_lea.vmem [#allocation9], %s337
        %s339 = sand.u32 %s155, 1
        %s340 = scalar_lea.sflag [#allocation11], %s339
        %s341 = sand.u32 %s155, 1
        %s342 = smul.addr %s341, 8
        %s343 = scalar_lea.vmem [#allocation10], %s342
        // Predicated region
        $region45: #{tpu_custom_call.1} parent=27 // pred_check
          %p344 = pneg %p137
        $region46: #{tpu_custom_call.1} parent=27 // pred_check_branch
          %346 = sbr.rel (%p344) target = $region48
        $region47: #{tpu_custom_call.1} parent=27 // pred_region
          %s348 = ssub.s32 128, 128
          %349 = vsyncadd %s335, %s348
          %s350 = sadd.s32 %s34, %s33
          %s351 = smul.addr %s350, 128
          %s352 = scalar_lea.hbm %s2, %s351
          %s354 = sshll.u32 %s338, 4
          %s355 = int_to_ptr.vmem [resolvable:$true] %s354
          %357 = dma.vmem_to_hbm [thread:$0]  %s355, 128, %s352, %s335
        $region48: #{tpu_custom_call.1} parent=27 // pred_fallthru
          _
        // Predicated region
        $region49: #{tpu_custom_call.1} parent=27 // pred_check
          %p358 = pneg %p165
        $region50: #{tpu_custom_call.1} parent=27 // pred_check_branch
          %360 = sbr.rel (%p358) target = $region52
        $region51: #{tpu_custom_call.1} parent=27 // pred_region
          %s362 = ssub.s32 128, 128
          %363 = vsyncadd %s340, %s362
          %s364 = sadd.s32 %s34, %s33
          %s365 = smul.addr %s364, 128
          %s366 = scalar_lea.hbm %s3, %s365
          %s368 = sshll.u32 %s343, 4
          %s369 = int_to_ptr.vmem [resolvable:$true] %s368
          %371 = dma.vmem_to_hbm [thread:$0]  %s369, 128, %s366, %s340
        $region52: #{tpu_custom_call.1} parent=27 // pred_fallthru
          _
      $region28: #{tpu_custom_call.1} parent=5 // pred_fallthru
        _
      %p372 = scmp.le.s32.totalorder 2, %s22
      // Predicated region
      $region53: #{tpu_custom_call.1} parent=5 // pred_check
        %p373 = pneg %p372
      $region54: #{tpu_custom_call.1} parent=5 // pred_check_branch
        %375 = sbr.rel (%p373) target = $region56
      $region55: #{tpu_custom_call.1} parent=5 // pred_region
        %s376 = ssub.s32 %s22, 2
        // Predicated region
        $region57: #{tpu_custom_call.1} parent=55 // pred_check
          %p377 = pneg %p143
        $region58: #{tpu_custom_call.1} parent=55 // pred_check_branch
          %379 = sbr.rel (%p377) target = $region60
        $region59: #{tpu_custom_call.1} parent=55 // pred_region
          %s380 = sand.u32 %s128, 1
          %s381 = scalar_lea.sflag [#allocation6], %s380
          %s382 = sand.u32 %s128, 1
          %s383 = smul.addr %s382, 8
          %s384 = scalar_lea.vmem [#allocation9], %s383
          %385 = dma.done %s381, 128
        $region60: #{tpu_custom_call.1} parent=55 // pred_fallthru
          _
        // Predicated region
        $region61: #{tpu_custom_call.1} parent=55 // pred_check
          %p386 = pneg %p171
        $region62: #{tpu_custom_call.1} parent=55 // pred_check_branch
          %388 = sbr.rel (%p386) target = $region64
        $region63: #{tpu_custom_call.1} parent=55 // pred_region
          %s389 = sand.u32 %s156, 1
          %s390 = scalar_lea.sflag [#allocation11], %s389
          %s391 = sand.u32 %s156, 1
          %s392 = smul.addr %s391, 8
          %s393 = scalar_lea.vmem [#allocation10], %s392
          %394 = dma.done %s390, 128
        $region64: #{tpu_custom_call.1} parent=55 // pred_fallthru
          _
      $region56: #{tpu_custom_call.1} parent=5 // pred_fallthru
        _
    $region6: #{tpu_custom_call.1} parent=1 // loop_footer
      %s26 = sadd.s32 1, %s22
    $region7: #{tpu_custom_call.1} parent=1 // loop_footer_branch
      %21 = sbr.rel target = $region3
    $region8: #{tpu_custom_call.1} parent=1 // loop_exit
      _
    %395 = vsyncpa [#allocation5], 1
    %s396 = scalar_lea.sflag [#allocation5], 1
    %397 = vsyncpa %s396, 1
    %398 = vsyncpa [#allocation8], 1
    %s399 = scalar_lea.sflag [#allocation8], 1
    %400 = vsyncpa %s399, 1
    %401 = vsyncpa [#allocation6], 1
    %s402 = scalar_lea.sflag [#allocation6], 1
    %403 = vsyncpa %s402, 1
    %404 = vsyncpa [#allocation11], 1
    %s405 = scalar_lea.sflag [#allocation11], 1
    %406 = vsyncpa %s405, 1

</llo_original>
